<compile_context>
chip_gen: v7x
topology: tpu7x:2x2x1
jax: 0.10.0
libtpu: 0.0.40
codegen_flags: <defaults>
</compile_context>

<pallas_src>
import functools

import numpy as np

import jax
import jax.numpy as jnp
from jax import lax
from jax.experimental import pallas as pl
from jax.experimental.pallas import tpu as pltpu

NEG_SLOPE = 0.01   # F.leaky_relu default
BN_EPS = 1e-5      # nn.BatchNorm2d default

# ConvTranspose2d(k=4, s=2, p=1) sub-pixel decomposition tables.
# Output-row parity r uses kernel rows _KH[r] read at input-row offsets _DI[r]
# (same tables apply to the column direction).
_KH = {0: (1, 3), 1: (0, 2)}
_DI = {0: (0, -1), 1: (1, 0)}


# ----------------------------------------------------------------------------
# Pallas kernels
# ----------------------------------------------------------------------------
def _fc_tconv1_kernel(z_ref, w_ref, b_ref, o_ref):
    """relu(z @ W + b): the pre-composed fc+view+t_conv_1+BN map."""
    y = jnp.dot(z_ref[...], w_ref[...], preferred_element_type=jnp.float32)
    o_ref[...] = jnp.maximum(y + b_ref[...], 0.0)


def _stage_kernel(x_ref, c1w_ref, c1sh_ref, c2w_ref, c2sh_ref,
                  tw_ref, tsh_ref, o_ref, *, H, W, final_act, roll_sign):
    """ResidualBlock followed by a ConvTranspose2d(k4,s2,p1) + activation.

    x_ref:   (Cin, M) activation, M = B*H*W (flat spatial on lanes)
    c*w_ref: (9, Cin, Cin)  BN-scale-folded 3x3 conv taps (t = kh*3 + kw)
    c*sh_ref:(Cin, 1)       BN shift
    tw_ref:  (16, Cout, Cin) tconv sub-kernels indexed by (r, c, a, b)
    tsh_ref: (Cout, 1)      BN shift of the tconv (zeros when no BN)
    o_ref:   (4, Cout, M)   the 4 sub-pixel output phases (r*2 + c)
    """
    M = x_ref.shape[-1]
    x = x_ref[...]

    # Spatial-validity masks from a lane iota (H, W are powers of two).
    lane = lax.broadcasted_iota(jnp.int32, (1, M), 1)
    row = (lane // W) % H
    col = lane % W
    row_ok = {-1: jnp.where(row >= 1, 1.0, 0.0),
              0: None,
              1: jnp.where(row < H - 1, 1.0, 0.0)}
    col_ok = {-1: jnp.where(col >= 1, 1.0, 0.0),
              0: None,
              1: jnp.where(col < W - 1, 1.0, 0.0)}

    def shifted(v, dh, dw):
        # shifted[m] = v[m + dh*W + dw] (zero outside the image / row)
        off = dh * W + dw
        if off != 0:
            v = pltpu.roll(v, (roll_sign * off) % M, 1)
        if row_ok[dh] is not None:
            v = v * row_ok[dh]
        if col_ok[dw] is not None:
            v = v * col_ok[dw]
        return v

    def conv3x3(v, w_ref):
        acc = None
        t = 0
        for dh in (-1, 0, 1):
            for dw in (-1, 0, 1):
                term = jnp.dot(w_ref[t], shifted(v, dh, dw),
                               preferred_element_type=jnp.float32)
                acc = term if acc is None else acc + term
                t += 1
        return acc

    def leaky(v):
        return jnp.where(v > 0, v, NEG_SLOPE * v)

    # ResidualBlock: out = x + leaky_relu(BN(conv2(leaky_relu(BN(conv1(x))))))
    h = leaky(conv3x3(x, c1w_ref) + c1sh_ref[...])
    h = x + leaky(conv3x3(h, c2w_ref) + c2sh_ref[...])

    # Transposed conv: 4 sub-pixel phases, 2x2 taps each (no zero dilation).
    taps = {(dh, dw): shifted(h, dh, dw)
            for dh in (-1, 0, 1) for dw in (-1, 0, 1)}
    for r in (0, 1):
        for c in (0, 1):
            acc = None
            for a in (0, 1):
                for b_ in (0, 1):
                    idx = ((r * 2 + c) * 2 + a) * 2 + b_
                    term = jnp.dot(tw_ref[idx], taps[(_DI[r][a], _DI[c][b_])],
                                   preferred_element_type=jnp.float32)
                    acc = term if acc is None else acc + term
            y = acc + tsh_ref[...]
            y = jnp.maximum(y, 0.0) if final_act == "relu" else jnp.tanh(y)
            o_ref[r * 2 + c] = y


def _probe_roll_sign():
    """Determine pltpu.roll's direction convention once at startup."""
    def kern(x_ref, o_ref):
        o_ref[...] = pltpu.roll(x_ref[...], 1, 1)

    x = jnp.tile(jnp.arange(128, dtype=jnp.float32)[None, :], (8, 1))
    out = pl.pallas_call(
        kern, out_shape=jax.ShapeDtypeStruct((8, 128), jnp.float32))(x)
    val = float(jax.device_get(out)[0, 0])
    # np.roll semantics -> out[0] == 127 -> need shift = -offset.
    return 1 if val == 1.0 else -1


# ----------------------------------------------------------------------------
# Prepare step: fold BN, compose fc+t_conv_1, repack conv/tconv taps (once).
# ----------------------------------------------------------------------------
def _bn_affine_np(bn):
    gamma = np.asarray(bn["gamma"], np.float32)
    beta = np.asarray(bn["beta"], np.float32)
    mean = np.asarray(bn["mean"], np.float32)
    var = np.asarray(bn["var"], np.float32)
    scale = gamma / np.sqrt(var + BN_EPS)
    shift = beta - mean * scale
    return scale, shift


def _tconv_matrix(w_iohw, hin, win, stride=2, padding=1):
    """Dense matrix of ConvTranspose2d over NCHW-flattened in/out (tiny)."""
    ci, co, k, _ = w_iohw.shape
    hout = (hin - 1) * stride - 2 * padding + k
    wout = (win - 1) * stride - 2 * padding + k
    t = np.zeros((co, hout, wout, ci, hin, win), dtype=np.float32)
    for i in range(hin):
        for j in range(win):
            for kh in range(k):
                oi = i * stride - padding + kh
                if not 0 <= oi < hout:
                    continue
                for kw in range(k):
                    oj = j * stride - padding + kw
                    if not 0 <= oj < wout:
                        continue
                    t[:, oi, oj, :, i, j] += w_iohw[:, :, kh, kw].T
    return t.reshape(co * hout * wout, ci * hin * win)


def prepare_params(params, conv_dim):
    cd = conv_dim
    c1 = cd * 2

    # --- fc + view + t_conv_1 + BN1 composed into one affine map z -> c1*64.
    t_mat = _tconv_matrix(np.asarray(params["tconv1_w"], np.float32), 4, 4)
    w_fc = np.asarray(params["fc_w"], np.float32)           # (cd*4*16, z)
    b_fc = np.asarray(params["fc_b"], np.float32)
    s1, sh1 = _bn_affine_np(params["tconv1_bn"])             # (c1,)
    s1v, sh1v = np.repeat(s1, 64), np.repeat(sh1, 64)
    a_mat = s1v[:, None] * (t_mat @ w_fc)                    # (c1*64, z)
    bias = s1v * (t_mat @ b_fc) + sh1v

    def conv_taps(w, bn):
        s, sh = _bn_affine_np(bn)
        w = np.asarray(w, np.float32) * s[:, None, None, None]
        taps = np.stack([w[:, :, kh, kw]
                         for kh in range(3) for kw in range(3)], 0)
        return jnp.asarray(taps), jnp.asarray(sh[:, None])

    def tconv_taps(w, bn):
        w = np.asarray(w, np.float32)                        # (Ci, Co, 4, 4)
        if bn is not None:
            s, sh = _bn_affine_np(bn)
        else:
            s = np.ones((w.shape[1],), np.float32)
            sh = np.zeros((w.shape[1],), np.float32)
        taps = []
        for r in (0, 1):
            for c in (0, 1):
                for a in (0, 1):
                    for b_ in (0, 1):
                        kh, kw = _KH[r][a], _KH[c][b_]
                        taps.append(s[:, None] * w[:, :, kh, kw].T)
        return jnp.asarray(np.stack(taps, 0)), jnp.asarray(sh[:, None])

    prep = {"w1": jnp.asarray(a_mat.T.astype(np.float32)),
            "b1": jnp.asarray(bias[None, :].astype(np.float32))}
    prep["r1c1_w"], prep["r1c1_sh"] = conv_taps(params["resd1_c1_w"],
                                                params["resd1_c1_bn"])
    prep["r1c2_w"], prep["r1c2_sh"] = conv_taps(params["resd1_c2_w"],
                                                params["resd1_c2_bn"])
    prep["t2_w"], prep["t2_sh"] = tconv_taps(params["tconv2_w"],
                                             params["tconv2_bn"])
    prep["r2c1_w"], prep["r2c1_sh"] = conv_taps(params["resd2_c1_w"],
                                                params["resd2_c1_bn"])
    prep["r2c2_w"], prep["r2c2_sh"] = conv_taps(params["resd2_c2_w"],
                                                params["resd2_c2_bn"])
    prep["t3_w"], prep["t3_sh"] = tconv_taps(params["tconv3_w"], None)
    return prep


# ----------------------------------------------------------------------------
# Forward pass (matches the PyTorch module's forward)
# ----------------------------------------------------------------------------
def _phases_to_cm(ph, C, B, H, W):
    """(4, C, B*H*W) phase planes -> (C, B*2H*2W) flat layout (space-to-depth)."""
    ph = ph.reshape(2, 2, C, B, H, W)
    ph = ph.transpose(2, 3, 4, 0, 5, 1)          # (C, B, H, r, W, c)
    return ph.reshape(C, B * 2 * H * 2 * W)


def _phases_to_nchw(ph, C, B, H, W):
    ph = ph.reshape(2, 2, C, B, H, W)
    ph = ph.transpose(3, 2, 4, 0, 5, 1)          # (B, C, H, r, W, c)
    return ph.reshape(B, C, 2 * H, 2 * W)


def generator_forward(prep, z, *, conv_dim, roll_sign):
    B = z.shape[0]
    cd = conv_dim
    c1 = cd * 2

    # stage 0: relu(BN(t_conv_1(view(fc(z)))))  -> 8x8, c1 channels
    h = pl.pallas_call(
        _fc_tconv1_kernel,
        out_shape=jax.ShapeDtypeStruct((B, c1 * 64), jnp.float32),
    )(z, prep["w1"], prep["b1"])
    x = h.reshape(B, c1, 8, 8).transpose(1, 0, 2, 3).reshape(c1, B * 64)

    # stage 1: resd_1 + relu(BN(t_conv_2(.)))   -> 16x16, cd channels
    ph = pl.pallas_call(
        functools.partial(_stage_kernel, H=8, W=8, final_act="relu",
                          roll_sign=roll_sign),
        out_shape=jax.ShapeDtypeStruct((4, cd, B * 64), jnp.float32),
    )(x, prep["r1c1_w"], prep["r1c1_sh"], prep["r1c2_w"], prep["r1c2_sh"],
      prep["t2_w"], prep["t2_sh"])
    x = _phases_to_cm(ph, cd, B, 8, 8)

    # stage 2: resd_2 + tanh(t_conv_3(.))       -> 32x32, 3 channels
    ph = pl.pallas_call(
        functools.partial(_stage_kernel, H=16, W=16, final_act="tanh",
                          roll_sign=roll_sign),
        out_shape=jax.ShapeDtypeStruct((4, 3, B * 256), jnp.float32),
    )(x, prep["r2c1_w"], prep["r2c1_sh"], prep["r2c2_w"], prep["r2c2_sh"],
      prep["t3_w"], prep["t3_sh"])
    return _phases_to_nchw(ph, 3, B, 16, 16)     # (B, 3, 32, 32) NCHW


# ----------------------------------------------------------------------------
# Parameters (deterministic synthetic init, PyTorch shape conventions)
# ----------------------------------------------------------------------------
def init_params(key, z_size, conv_dim):
    keys = iter(jax.random.split(key, 40))

    def nrm(shape, std=0.05):
        return std * jax.random.normal(next(keys), shape, dtype=jnp.float32)

    def bn(c):
        return {
            "gamma": 1.0 + 0.1 * jax.random.normal(next(keys), (c,), jnp.float32),
            "beta": 0.1 * jax.random.normal(next(keys), (c,), jnp.float32),
            "mean": 0.1 * jax.random.normal(next(keys), (c,), jnp.float32),
            "var": 1.0 + 0.1 * jnp.abs(jax.random.normal(next(keys), (c,), jnp.float32)),
        }

    cd = conv_dim
    p = {}
    p["fc_w"] = nrm((cd * 4 * 4 * 4, z_size))      # nn.Linear weight: (out, in)
    p["fc_b"] = nrm((cd * 4 * 4 * 4,))
    p["tconv1_w"] = nrm((cd * 4, cd * 2, 4, 4))    # ConvTranspose2d: (in, out, kH, kW)
    p["tconv1_bn"] = bn(cd * 2)
    p["resd1_c1_w"] = nrm((cd * 2, cd * 2, 3, 3))  # Conv2d: (out, in, kH, kW)
    p["resd1_c1_bn"] = bn(cd * 2)
    p["resd1_c2_w"] = nrm((cd * 2, cd * 2, 3, 3))
    p["resd1_c2_bn"] = bn(cd * 2)
    p["tconv2_w"] = nrm((cd * 2, cd, 4, 4))
    p["tconv2_bn"] = bn(cd)
    p["resd2_c1_w"] = nrm((cd, cd, 3, 3))
    p["resd2_c1_bn"] = bn(cd)
    p["resd2_c2_w"] = nrm((cd, cd, 3, 3))
    p["resd2_c2_bn"] = bn(cd)
    p["tconv3_w"] = nrm((cd, 3, 4, 4))
    return p


if __name__ == "__main__":
    z_size = 100
    conv_dim = 8
    batch = 2

    key = jax.random.PRNGKey(0)
    k_params, k_z = jax.random.split(key)
    params = init_params(k_params, z_size, conv_dim)
    z = jax.random.normal(k_z, (batch, z_size), dtype=jnp.float32)

    roll_sign = _probe_roll_sign()          # fix pltpu.roll direction once
    prep = prepare_params(params, conv_dim)  # fold BN / repack weights once

    fwd = jax.jit(functools.partial(generator_forward, conv_dim=conv_dim,
                                    roll_sign=roll_sign))
    out = jax.block_until_ready(fwd(prep, z))

    assert out.shape == (batch, 3, 32, 32), out.shape
    assert bool(jnp.all(jnp.isfinite(out)))
    assert bool(jnp.all(jnp.abs(out) <= 1.0))  # tanh output range
    print("KERNEL_OK")
</pallas_src>

<mosaic_0001>
module attributes {stable_mosaic.version = 11 : i64} {
  func.func @kern(%arg0: memref<8x128xf32, #tpu.memory_space<vmem>>, %arg1: memref<8x128xf32, #tpu.memory_space<vmem>>) attributes {dimension_semantics = [], scalar_prefetch = 0 : i64, scratch_operands = 0 : i64, tpu.core_type = #tpu.core_type<tc>} {
    %c0 = arith.constant 0 : index
    %c0_0 = arith.constant 0 : index
    %0 = vector.load %arg0[%c0, %c0_0] : memref<8x128xf32, #tpu.memory_space<vmem>>, vector<8x128xf32>
    %c1_i32 = arith.constant 1 : i32
    %1 = tpu.dynamic_rotate %0 by %c1_i32 dim 1 : vector<8x128xf32>, i32 -> vector<8x128xf32>
    %c0_1 = arith.constant 0 : index
    %c0_2 = arith.constant 0 : index
    %2 = vector.load %arg1[%c0_1, %c0_2] : memref<8x128xf32, #tpu.memory_space<vmem>>, vector<8x128xf32>
    tpu.vector_store %arg1[%c0_1, %c0_2], %1 {strides = array<i32>} : memref<8x128xf32, #tpu.memory_space<vmem>>, vector<8x128xf32>,
    return
  }
}

</mosaic_0001>

<llo_original>
// kernel: tpu_custom_call.1
$region0: #{tpu_custom_call.1}
  #allocation0 [shape = 'u32[]', space=smem, size = 0x4, offset = 0x4, fixed_abs, tag = 'smem constant byte address 0x4 - core index']
  #allocation1 [shape = 'u32[144,128]{1,0:T(1,128)}', space=vmem, size = 0x12000, scoped, tag = 'internal scratch']
  %s0 = inlined_call_operand.hbm [shape: f32[8,128], index: 0, kind: input, shape index: {}]
  %s1 = inlined_call_operand.hbm [shape: f32[8,128], index: 1, kind: output, shape index: {}]
  %s2 = sld [smem:[#allocation0]]
  $region18: #{tpu_custom_call.1} parent=0
    _
  %s4 = ssub.s32 1, %s2
  %s5 = scalar_select 0, %s4, %s2
  $region1: #{tpu_custom_call.1} parent=0
    #allocation2 [shape = 'u8[4096]{0}', space=vmem, size = 0x1000, scoped, tag = 'input window, operand 0, single buffered']
    #allocation3 [shape = 's32[1]{0}', space=sflag, size = 0x4, scoped, tag = 'scoped memory for tpu_custom_call.1']
    #allocation4 [shape = 's32[1]{0}', space=sflag, size = 0x4, scoped, tag = 'scoped memory for tpu_custom_call.1']
    #allocation5 [shape = 'u8[4096]{0}', space=vmem, size = 0x1000, scoped, tag = 'output window, operand 0, single buffered']
    %6 = vsyncpa [#allocation3], 0
    %7 = vsyncpa [#allocation4], 0
    // Predicated region
    $region2: #{tpu_custom_call.1} parent=1 // pred_check
      _
    $region3: #{tpu_custom_call.1} parent=1 // pred_check_branch
      %9 = sbr.rel (0) target = $region5
    $region4: #{tpu_custom_call.1} parent=1 // pred_region
      %s11 = ssub.s32 128, 128
      %12 = vsyncadd [#allocation3], %s11
      %s14 = sshll.u32 [#allocation2], 4
      %s15 = int_to_ptr.vmem [resolvable:$true] %s14
      %17 = dma.hbm_to_vmem [thread:$0]  %s0, 128, %s15, [#allocation3]
    $region5: #{tpu_custom_call.1} parent=1 // pred_fallthru
      _
    // Predicated region
    $region6: #{tpu_custom_call.1} parent=1 // pred_check
      _
    $region7: #{tpu_custom_call.1} parent=1 // pred_check_branch
      %19 = sbr.rel (0) target = $region9
    $region8: #{tpu_custom_call.1} parent=1 // pred_region
      %20 = dma.done [#allocation3], 128
    $region9: #{tpu_custom_call.1} parent=1 // pred_fallthru
      _
    %v21 = vld [vmem:[#allocation2] sm:$0xff]
    %22 = vrot.lane.b32.xlu0 %v21, 1
    %v23 = vpop.permute.xlu0 %22
    %24 = vst [vmem:[#allocation5] sm:$0xff] %v23
    // Predicated region
    $region10: #{tpu_custom_call.1} parent=1 // pred_check
      _
    $region11: #{tpu_custom_call.1} parent=1 // pred_check_branch
      %26 = sbr.rel (0) target = $region13
    $region12: #{tpu_custom_call.1} parent=1 // pred_region
      %s28 = ssub.s32 128, 128
      %29 = vsyncadd [#allocation4], %s28
      %s31 = sshll.u32 [#allocation5], 4
      %s32 = int_to_ptr.vmem [resolvable:$true] %s31
      %34 = dma.vmem_to_hbm [thread:$0]  %s32, 128, %s1, [#allocation4]
    $region13: #{tpu_custom_call.1} parent=1 // pred_fallthru
      _
    // Predicated region
    $region14: #{tpu_custom_call.1} parent=1 // pred_check
      _
    $region15: #{tpu_custom_call.1} parent=1 // pred_check_branch
      %36 = sbr.rel (0) target = $region17
    $region16: #{tpu_custom_call.1} parent=1 // pred_region
      %37 = dma.done [#allocation4], 128
    $region17: #{tpu_custom_call.1} parent=1 // pred_fallthru
      _
    %38 = vsyncpa [#allocation3], 1
    %39 = vsyncpa [#allocation4], 1

</llo_original>
